<compile_context>
chip_gen: v7x
topology: tpu7x:2x2x1
jax: 0.10.0
libtpu: 0.0.40
codegen_flags: <defaults>
</compile_context>

<pallas_src>
import jax
import jax.numpy as jnp
from jax.experimental import pallas as pl
from jax.experimental.pallas import tpu as pltpu

_NBUF = 4  # number of in-flight HBM->HBM DMAs (review: 2-4 semaphores)


def _pick_lane_cols(total):
    """Largest multiple-of-128 divisor of `total` (capped at 32768), else None."""
    for c in (32768, 16384, 8192, 4096, 2048, 1024, 512, 256, 128):
        if total % c == 0:
            return c
    return None


def _pick_tile_rows(rows, cols, itemsize, target_tile_bytes):
    """Rows per DMA chunk sized from a byte budget (not a fixed row cap)."""
    tr = max(1, int(target_tile_bytes) // (cols * itemsize))
    if tr >= 8:
        tr -= tr % 8  # keep chunk boundaries on (8, 128) HBM tile rows
    return min(tr, rows)


def _make_hbm_copy_kernel(rows, tile_rows, nchunks):
    """Kernel: chunked HBM->HBM DMA copy of a (rows, cols) slab."""
    last_start = rows - tile_rows  # static, >= 0

    def chunk(x_hbm, o_hbm, sems, c):
        # `c` is a Python int in the prologue and a traced int32 in the loop.
        # Clamp the start row so the final (possibly ragged) chunk stays in
        # bounds; all descriptors then share one static shape, keeping the
        # semaphore byte counts uniform across slot reuse.
        start = jnp.minimum(c * tile_rows, last_start)
        return pltpu.make_async_copy(
            x_hbm.at[pl.ds(start, tile_rows), :],
            o_hbm.at[pl.ds(start, tile_rows), :],
            sems.at[c % _NBUF],
        )

    def kernel(x_hbm, o_hbm, sems):
        # Prime up to _NBUF DMAs (static unroll).
        for c in range(min(_NBUF, nchunks)):
            chunk(x_hbm, o_hbm, sems, c).start()

        @pl.loop(0, nchunks)
        def _(c):
            # Retire chunk c, then refill its semaphore slot with chunk c+_NBUF.
            chunk(x_hbm, o_hbm, sems, c).wait()

            @pl.when(c + _NBUF < nchunks)
            def _():
                chunk(x_hbm, o_hbm, sems, c + _NBUF).start()

    return kernel


def flattener_forward(x, materialize=True, min_kernel_bytes=1 << 20,
                      target_tile_bytes=8 << 20):
    """Pallas equivalent of Flattener.forward: x.view(x.size(0), -1)."""
    n = x.shape[0]
    flat = 1
    for d in x.shape[1:]:
        flat *= d

    # The actual Flattener semantics: a row-major, metadata-only view.
    # TODO(synk): true aliasing ("view") semantics cannot be expressed as a
    # Pallas output (outputs are fresh buffers); the zero-copy path is a reshape.
    out_view = x.reshape(n, flat)

    total = n * flat
    itemsize = jnp.dtype(x.dtype).itemsize
    total_bytes = total * itemsize

    # Zero-copy path: requested, empty, or too small to amortize a custom call.
    if (not materialize) or total == 0 or total_bytes < min_kernel_bytes:
        return out_view

    # Lane-dense slab reinterpretation (metadata-only for contiguous inputs);
    # ragged totals fall back to the logical (n, flat) slab.
    cols = _pick_lane_cols(total)
    if cols is None:
        rows, cols = n, flat
        slab = out_view
    else:
        rows = total // cols
        slab = out_view.reshape(rows, cols)

    tile_rows = _pick_tile_rows(rows, cols, itemsize, target_tile_bytes)
    nchunks = -(-rows // tile_rows)  # ceil division, static

    copied = pl.pallas_call(
        _make_hbm_copy_kernel(rows, tile_rows, nchunks),
        out_shape=jax.ShapeDtypeStruct((rows, cols), x.dtype),
        # Raw HBM refs on both sides: pure DMA work, no VMEM round trip.
        in_specs=[pl.BlockSpec(memory_space=pl.ANY)],
        out_specs=pl.BlockSpec(memory_space=pl.ANY),
        scratch_shapes=[pltpu.SemaphoreType.DMA((_NBUF,))],
        cost_estimate=pl.CostEstimate(
            flops=0, transcendentals=0, bytes_accessed=2 * total_bytes),
    )(slab)

    # Metadata-only reshape back to the logical flattened shape.
    return copied.reshape(n, flat)


if __name__ == "__main__":
    key = jax.random.PRNGKey(0)

    # Spec-shaped input: (batch=2, channels=4, 16, 16).
    x = jax.random.normal(key, (2, 4, 16, 16), dtype=jnp.float32)
    expected = x.reshape(x.shape[0], -1)

    # 1) Default production path at this size: zero-copy reshape.
    y_view = jax.block_until_ready(flattener_forward(x))
    assert y_view.shape == (2, 4 * 16 * 16), y_view.shape
    assert y_view.dtype == x.dtype
    assert bool(jnp.array_equal(y_view, expected))

    # 2) Force the HBM->HBM DMA kernel at the spec shape (single chunk).
    y = flattener_forward(x, materialize=True, min_kernel_bytes=0,
                          target_tile_bytes=4 * 1024)
    y = jax.block_until_ready(y)
    assert y.shape == (2, 4 * 16 * 16), y.shape
    assert y.dtype == x.dtype
    assert bool(jnp.array_equal(y, expected))

    # 3) Multi-chunk path: slab (21, 256), 4-row chunks -> 6 chunks > _NBUF,
    #    exercising semaphore-slot refill and the clamped final chunk.
    x2 = jax.random.normal(jax.random.PRNGKey(0), (6, 8, 112), dtype=jnp.float32)
    y2 = flattener_forward(x2, materialize=True, min_kernel_bytes=0,
                           target_tile_bytes=4 * 1024)
    y2 = jax.block_until_ready(y2)
    assert bool(jnp.array_equal(y2, x2.reshape(6, -1)))

    # 4) Ragged total (not a multiple of 128): (n, flat) fallback slab.
    x3 = jax.random.normal(jax.random.PRNGKey(0), (3, 5, 7, 9), dtype=jnp.float32)
    y3 = flattener_forward(x3, materialize=True, min_kernel_bytes=0)
    y3 = jax.block_until_ready(y3)
    assert bool(jnp.array_equal(y3, x3.reshape(3, -1)))

    print("KERNEL_OK")
</pallas_src>

<mosaic_0001>
module attributes {stable_mosaic.version = 11 : i64} {
  func.func @kernel(%arg0: memref<1x2048xf32, #tpu.memory_space<any>>, %arg1: memref<1x2048xf32, #tpu.memory_space<any>>, %arg2: memref<4x!tpu.dma_semaphore, #tpu.memory_space<semaphore_mem>>) attributes {dimension_semantics = [], scalar_prefetch = 0 : i64, scratch_operands = 1 : i64, tpu.core_type = #tpu.core_type<tc>} {
    %c0_i32 = arith.constant 0 : i32
    %c0_i32_0 = arith.constant 0 : i32
    %0 = arith.minsi %c0_i32, %c0_i32_0 : i32
    %c0_i32_1 = arith.constant 0 : i32
    %c0_i32_2 = arith.constant 0 : i32
    %1 = tpu.memref_slice %arg0[%0, %c0_i32_2] : memref<1x2048xf32, #tpu.memory_space<any>> -> memref<1x2048xf32, #tpu.memory_space<any>>
    %c0_i32_3 = arith.constant 0 : i32
    %2 = tpu.memref_slice %arg1[%0, %c0_i32_3] : memref<1x2048xf32, #tpu.memory_space<any>> -> memref<1x2048xf32, #tpu.memory_space<any>>
    %3 = tpu.memref_slice %arg2[%c0_i32_1] : memref<4x!tpu.dma_semaphore, #tpu.memory_space<semaphore_mem>> -> memref<1x!tpu.dma_semaphore, #tpu.memory_space<semaphore_mem>>
    %4 = tpu.memref_squeeze %3 : memref<1x!tpu.dma_semaphore, #tpu.memory_space<semaphore_mem>> -> memref<!tpu.dma_semaphore, #tpu.memory_space<semaphore_mem>>
    tpu.enqueue_dma source(%1 : memref<1x2048xf32, #tpu.memory_space<any>>) target(%2 : memref<1x2048xf32, #tpu.memory_space<any>>) target_semaphore(%4 : memref<!tpu.dma_semaphore, #tpu.memory_space<semaphore_mem>>)
    %c0_i32_4 = arith.constant 0 : i32
    %c1_i32 = arith.constant 1 : i32
    %5 = arith.muli %c0_i32_4, %c1_i32 : i32
    %c0_i32_5 = arith.constant 0 : i32
    %6 = arith.addi %c0_i32_5, %5 : i32
    %c1_i32_6 = arith.constant 1 : i32
    %7 = arith.muli %6, %c1_i32_6 : i32
    %c0_i32_7 = arith.constant 0 : i32
    %8 = arith.minsi %7, %c0_i32_7 : i32
    %c4_i32 = arith.constant 4 : i32
    %c0_i32_8 = arith.constant 0 : i32
    %9 = arith.cmpi eq, %c4_i32, %c0_i32_8 : i32
    %c1_i32_9 = arith.constant 1 : i32
    %10 = arith.select %9, %c1_i32_9, %c4_i32 : i32
    %11 = arith.remsi %6, %10 : i32
    %c0_i32_10 = arith.constant 0 : i32
    %12 = arith.cmpi ne, %11, %c0_i32_10 : i32
    %c0_i32_11 = arith.constant 0 : i32
    %13 = arith.cmpi slt, %11, %c0_i32_11 : i32
    %c0_i32_12 = arith.constant 0 : i32
    %14 = arith.cmpi slt, %10, %c0_i32_12 : i32
    %15 = arith.xori %13, %14 : i1
    %16 = arith.andi %15, %12 : i1
    %17 = arith.addi %11, %10 : i32
    %18 = arith.select %16, %17, %11 : i32
    %c0_i32_13 = arith.constant 0 : i32
    %19 = tpu.memref_slice %arg0[%8, %c0_i32_13] : memref<1x2048xf32, #tpu.memory_space<any>> -> memref<1x2048xf32, #tpu.memory_space<any>>
    %c0_i32_14 = arith.constant 0 : i32
    %20 = tpu.memref_slice %arg1[%8, %c0_i32_14] : memref<1x2048xf32, #tpu.memory_space<any>> -> memref<1x2048xf32, #tpu.memory_space<any>>
    %21 = tpu.memref_slice %arg2[%18] : memref<4x!tpu.dma_semaphore, #tpu.memory_space<semaphore_mem>> -> memref<1x!tpu.dma_semaphore, #tpu.memory_space<semaphore_mem>>
    %22 = tpu.memref_squeeze %21 : memref<1x!tpu.dma_semaphore, #tpu.memory_space<semaphore_mem>> -> memref<!tpu.dma_semaphore, #tpu.memory_space<semaphore_mem>>
    tpu.wait_dma2 semaphore(%22 : memref<!tpu.dma_semaphore, #tpu.memory_space<semaphore_mem>>) src(%19 : memref<1x2048xf32, #tpu.memory_space<any>>) dst(%20 : memref<1x2048xf32, #tpu.memory_space<any>>)
    %c4_i32_15 = arith.constant 4 : i32
    %23 = arith.addi %6, %c4_i32_15 : i32
    %c1_i32_16 = arith.constant 1 : i32
    %24 = arith.cmpi slt, %23, %c1_i32_16 : i32
    %25 = arith.extui %24 : i1 to i32
    %c0_i32_17 = arith.constant 0 : i32
    %26 = arith.cmpi ne, %25, %c0_i32_17 : i32
    scf.if %26 {
      %c4_i32_19 = arith.constant 4 : i32
      %27 = arith.addi %6, %c4_i32_19 : i32
      %c1_i32_20 = arith.constant 1 : i32
      %28 = arith.muli %27, %c1_i32_20 : i32
      %c0_i32_21 = arith.constant 0 : i32
      %29 = arith.minsi %28, %c0_i32_21 : i32
      %c4_i32_22 = arith.constant 4 : i32
      %c0_i32_23 = arith.constant 0 : i32
      %30 = arith.cmpi eq, %c4_i32_22, %c0_i32_23 : i32
      %c1_i32_24 = arith.constant 1 : i32
      %31 = arith.select %30, %c1_i32_24, %c4_i32_22 : i32
      %32 = arith.remsi %27, %31 : i32
      %c0_i32_25 = arith.constant 0 : i32
      %33 = arith.cmpi ne, %32, %c0_i32_25 : i32
      %c0_i32_26 = arith.constant 0 : i32
      %34 = arith.cmpi slt, %32, %c0_i32_26 : i32
      %c0_i32_27 = arith.constant 0 : i32
      %35 = arith.cmpi slt, %31, %c0_i32_27 : i32
      %36 = arith.xori %34, %35 : i1
      %37 = arith.andi %36, %33 : i1
      %38 = arith.addi %32, %31 : i32
      %39 = arith.select %37, %38, %32 : i32
      %c0_i32_28 = arith.constant 0 : i32
      %40 = tpu.memref_slice %arg0[%29, %c0_i32_28] : memref<1x2048xf32, #tpu.memory_space<any>> -> memref<1x2048xf32, #tpu.memory_space<any>>
      %c0_i32_29 = arith.constant 0 : i32
      %41 = tpu.memref_slice %arg1[%29, %c0_i32_29] : memref<1x2048xf32, #tpu.memory_space<any>> -> memref<1x2048xf32, #tpu.memory_space<any>>
      %42 = tpu.memref_slice %arg2[%39] : memref<4x!tpu.dma_semaphore, #tpu.memory_space<semaphore_mem>> -> memref<1x!tpu.dma_semaphore, #tpu.memory_space<semaphore_mem>>
      %43 = tpu.memref_squeeze %42 : memref<1x!tpu.dma_semaphore, #tpu.memory_space<semaphore_mem>> -> memref<!tpu.dma_semaphore, #tpu.memory_space<semaphore_mem>>
      tpu.enqueue_dma source(%40 : memref<1x2048xf32, #tpu.memory_space<any>>) target(%41 : memref<1x2048xf32, #tpu.memory_space<any>>) target_semaphore(%43 : memref<!tpu.dma_semaphore, #tpu.memory_space<semaphore_mem>>)
    } else {
    }
    %c1_i32_18 = arith.constant 1 : i32
    return
  }
}

</mosaic_0001>

<llo_original>
// kernel: tpu_custom_call.1
$region0: #{tpu_custom_call.1}
  #allocation0 [shape = 'u32[]', space=smem, size = 0x4, offset = 0x4, fixed_abs, tag = 'smem constant byte address 0x4 - core index']
  #allocation1 [shape = 'u32[144,128]{1,0:T(1,128)}', space=vmem, size = 0x12000, scoped, tag = 'internal scratch']
  #allocation2 [shape = 's32[4]{0}', space=sflag, size = 0x10, scoped, tag = 'scratch operand']
  #allocation3 [shape = 's32[]', space=sflag, size = 0x4, offset = 0, fixed_abs, tag = 'sflag constant byte address 0x0 - dummy sync flag']
  #allocation4 [shape = 'u32[0]{0}', space=smem, size = 0, offset = 0, fixed_abs, tag = 'smem constant byte address 0x0 - null']
  %s0 = inlined_call_operand.hbm [shape: f32[1,2048], index: 0, kind: input, shape index: {}]
  %s1 = inlined_call_operand.hbm [shape: f32[1,2048], index: 1, kind: output, shape index: {}]
  %s2 = sld [smem:[#allocation0]]
  $region2: #{tpu_custom_call.1} parent=0
    _
  %s4 = ssub.s32 1, %s2
  %s5 = scalar_select 0, %s4, %s2
  %s7 = sshll.u32 1, 14
  %s8 = sxor.u32 4294967295, %s7
  %s11 = sshll.u32 3, 24
  %s12 = sxor.u32 4294967295, %s11
  %s13 = sand.u32 0, %s12
  %s15 = sor.u32 %s13, 0
  %18 = dma.general %s0, 256, %s1, [#allocation2], [#allocation3], [#allocation4], %s15, 0
  %s19 = smul.u32 1, 16
  %s20 = sshll.u32 %s19, 4
  %21 = dma.done [#allocation2], %s20
  %22 = vsyncmov [#allocation2]
  %s23 = vpop.sfrf %22
  %p24 = scmp.eq.s32.totalorder %s23, 0
  %p25 = pneg %p24
  %27 = shalt.err (%p25)
  %s28 = scalar_lea.sflag [#allocation2], 1
  %29 = vsyncmov %s28
  %s30 = vpop.sfrf %29
  %p31 = scmp.eq.s32.totalorder %s30, 0
  %p32 = pneg %p31
  %34 = shalt.err (%p32)
  %s35 = scalar_lea.sflag [#allocation2], 2
  %36 = vsyncmov %s35
  %s37 = vpop.sfrf %36
  %p38 = scmp.eq.s32.totalorder %s37, 0
  %p39 = pneg %p38
  %41 = shalt.err (%p39)
  %s42 = scalar_lea.sflag [#allocation2], 3
  %43 = vsyncmov %s42
  %s44 = vpop.sfrf %43
  %p45 = scmp.eq.s32.totalorder %s44, 0
  %p46 = pneg %p45
  %48 = shalt.err (%p46)

</llo_original>
